<compile_context>
chip_gen: v6e
topology: v6e:2x2x1
jax: 0.10.0
libtpu: 0.0.40
codegen_flags: <defaults>
</compile_context>

<pallas_src>
import math

import jax
import jax.numpy as jnp
from jax import lax
from jax.experimental import pallas as pl
from jax.experimental.pallas import tpu as pltpu


# ----------------------------------------------------------------------------
# Helpers
# ----------------------------------------------------------------------------
def _round_up(n, m):
    return ((n + m - 1) // m) * m


def _vmem_capacity_bytes():
    """Physical VMEM of the current chip; conservative fallback (v7x) otherwise."""
    try:
        return int(pltpu.get_tpu_info().vmem_capacity_bytes)
    except Exception:
        return 64 << 20


def _plan_stream(n, hidden):
    """Plan the streamed vocab/sample axis.

    Returns (tile, n_pad, depth, vmem_cap) where
      * tile   : lane-dense columns per grid step (multiple of 128, pref. 256),
                 sized so `depth` bf16 weight buffers of [tile, hidden] stay
                 within ~half of physical VMEM,
      * n_pad  : padded extent (multiple of tile),
      * depth  : pipeline buffer count for the streamed weight operand.
    """
    n_pad = _round_up(n, 128)
    vmem_cap = _vmem_capacity_bytes()
    weight_budget = vmem_cap // 2              # VMEM reserved for streamed weight bufs
    row_bytes = hidden * 2                     # bf16 row

    max_tile = (weight_budget // (2 * row_bytes) // 256) * 256
    max_tile = max(256, min(2048, max_tile))

    if n_pad <= max_tile:
        # Whole problem fits in one (or two) tiles.  Split in two when that keeps
        # 128-lane alignment so both v7x TensorCores get a grid step.
        if n_pad >= 512 and (n_pad // 2) % 128 == 0:
            tile = n_pad // 2
        else:
            tile = n_pad
    else:
        tile = max_tile
        n_pad = _round_up(n_pad, tile)

    grid_n = n_pad // tile
    depth = 3 if (grid_n > 2 and tile <= 512
                  and 3 * tile * row_bytes <= weight_budget) else 2
    return tile, n_pad, depth, vmem_cap


# ----------------------------------------------------------------------------
# Kernel
# ----------------------------------------------------------------------------
def streamed_logits_kernel(x_ref, w_ref, c_ref, out_ref):
    # x: [B, H] bf16 (resident block), w: [T, H] bf16 (streamed tile),
    # c: [1, T] f32 fused correction row (bias - log(freq)), out: [B, T] f32.
    # dot_general contracts the last dim of both operands -> MXU, no transpose.
    out_ref[...] = lax.dot_general(
        x_ref[...], w_ref[...],
        dimension_numbers=(((1,), (1,)), ((), ())),
        preferred_element_type=jnp.float32) + c_ref[...]


def _streamed_logits(x_bf16, w_bf16, corr_row, tile, depth, vmem_cap):
    """x: [B,H] bf16, w: [Np,H] bf16, corr_row: [1,Np] f32; tile | Np.

    Returns x @ w.T + corr as f32 [B, Np], streaming the weights from HBM."""
    B, H = x_bf16.shape
    Np = w_bf16.shape[0]
    grid_n = Np // tile

    if grid_n > 1:
        w_spec = pl.BlockSpec((tile, H), lambda j: (j, 0),
                              pipeline_mode=pl.Buffered(depth))
    else:
        depth = 2
        w_spec = pl.BlockSpec((tile, H), lambda j: (j, 0))

    # Explicit scoped-VMEM limit sized to the actual buffers (+ headroom) so the
    # large tiles chosen by _plan_stream are never throttled by the default limit.
    B8 = _round_up(B, 8)
    vmem_need = (depth * tile * H * 2        # streamed weight buffers (bf16)
                 + 2 * B8 * H * 2            # resident activations
                 + 2 * 8 * tile * 4          # correction row (sublane-padded)
                 + 2 * B8 * tile * 4)        # output tiles (double-buffered)
    vmem_limit = min(vmem_cap, max(int(vmem_need * 1.25) + (2 << 20), 32 << 20))

    cost = pl.CostEstimate(
        flops=2 * B * H * Np,
        transcendentals=0,
        bytes_accessed=Np * H * 2 + B * Np * 4 + B * H * 2 + Np * 4)

    return pl.pallas_call(
        streamed_logits_kernel,
        out_shape=jax.ShapeDtypeStruct((B, Np), jnp.float32),
        grid=(grid_n,),
        in_specs=[
            pl.BlockSpec((B, H), lambda j: (0, 0)),      # x resident
            w_spec,                                       # weights streamed
            pl.BlockSpec((1, tile), lambda j: (0, j)),    # fused bias-log(freq)
        ],
        out_specs=pl.BlockSpec((B, tile), lambda j: (0, j)),
        compiler_params=pltpu.CompilerParams(
            dimension_semantics=("parallel",),
            vmem_limit_bytes=vmem_limit),
        cost_estimate=cost,
    )(x_bf16, w_bf16, corr_row)


# ----------------------------------------------------------------------------
# Module
# ----------------------------------------------------------------------------
class SampledSoftmax:
    def __init__(self, ntokens, nsampled, nhid, tied_weight=None, *, key=None):
        self.ntokens = ntokens
        self.nsampled = nsampled
        self.nhid = nhid
        self.training = True
        if key is None:
            key = jax.random.PRNGKey(0)
        kw, kb = jax.random.split(key)
        if tied_weight is not None:
            self.weight = jnp.asarray(tied_weight, jnp.float32)
        else:
            # initialize(): uniform(-stdv, stdv), stdv = sqrt(3 / (in_ + out_))
            # with (in_, out_) = weight.size() = (ntokens, nhid)
            stdv = math.sqrt(3.0 / (ntokens + nhid))
            self.weight = jax.random.uniform(
                kw, (ntokens, nhid), jnp.float32, minval=-stdv, maxval=stdv)
        # nn.Linear default bias init: uniform(-1/sqrt(fan_in), 1/sqrt(fan_in))
        bound = 1.0 / math.sqrt(nhid)
        self.bias = jax.random.uniform(
            kb, (ntokens,), jnp.float32, minval=-bound, maxval=bound)

        # ---- cached bf16 weights (perf): cast once, never per call ----
        self.weight_bf16 = self.weight.astype(jnp.bfloat16)         # [V, H] bf16

        # ---- cached, pre-padded weights / bias row for the full() path ----
        tile, V_pad, depth, cap = _plan_stream(ntokens, nhid)
        self._full_tile, self._V_pad = tile, V_pad
        self._full_depth, self._vmem_cap = depth, cap
        if V_pad != ntokens:
            self.weight_bf16_padded = (
                jnp.zeros((V_pad, nhid), jnp.bfloat16).at[:ntokens].set(self.weight_bf16))
            self.bias_row_padded = (
                jnp.zeros((1, V_pad), jnp.float32).at[0, :ntokens].set(self.bias))
        else:
            self.weight_bf16_padded = self.weight_bf16
            self.bias_row_padded = self.bias.reshape(1, ntokens)

    # ---------------- forward dispatch ----------------
    def __call__(self, inputs, labels, sample_ids=None, true_freq=None,
                 sample_freq=None, acc_hits=None, remove_accidental_match=False):
        if self.training:
            return self.sampled(inputs, labels, sample_ids, true_freq,
                                sample_freq, acc_hits,
                                remove_accidental_match=remove_accidental_match)
        return self.full(inputs, labels)

    # ---------------- training path ----------------
    def sampled(self, inputs, labels, sample_ids, true_freq, sample_freq,
                acc_hits, remove_accidental_match=False):
        B, H = inputs.shape
        S = sample_ids.shape[0]
        x_f32 = inputs.astype(jnp.float32)

        # --- true logits: tiny [B,H] mul+reduce -> single fused XLA VPU op ---
        true_w = jnp.take(self.weight, labels, axis=0).astype(jnp.float32)
        true_b = jnp.take(self.bias, labels, axis=0).astype(jnp.float32)
        true_logits = (jnp.sum(x_f32 * true_w, axis=1) + true_b
                       - jnp.log(true_freq.astype(jnp.float32))).reshape(B, 1)

        # --- sampled logits: stream bf16 [S_pad, H] weights through the MXU ---
        tile, S_pad, depth, cap = _plan_stream(S, H)
        sample_ids = jnp.asarray(sample_ids, jnp.int32)

        # One fused gather from the cached bf16 weights (padded ids -> padded tile).
        if S_pad != S:
            ids_pad = jnp.zeros((S_pad,), jnp.int32).at[:S].set(sample_ids)
        else:
            ids_pad = sample_ids
        samp_w_bf = jnp.take(self.weight_bf16, ids_pad, axis=0)       # [S_pad, H] bf16

        # fold bias - log(freq) into a single f32 correction row (padded cols = 0,
        # they are sliced off below).
        samp_b = jnp.take(self.bias, sample_ids, axis=0).astype(jnp.float32)
        scorr = samp_b - jnp.log(sample_freq.astype(jnp.float32))
        if S_pad != S:
            scorr_row = jnp.zeros((1, S_pad), jnp.float32).at[0, :S].set(scorr)
        else:
            scorr_row = scorr.reshape(1, S)

        sample_logits = _streamed_logits(
            inputs.astype(jnp.bfloat16), samp_w_bf, scorr_row, tile, depth, cap)[:, :S]

        # accidental-hit removal as a sparse scatter in the wrapper (no dense
        # [B,S] mask DMA).  Original sets -1e37 before subtracting log(freq);
        # -1e37 - log(f) rounds to -1e37 in f32, so setting after the fused
        # correction is numerically identical.
        if remove_accidental_match and acc_hits is not None:
            rows, cols = acc_hits
            rows = jnp.asarray(rows, jnp.int32)
            cols = jnp.asarray(cols, jnp.int32)
            sample_logits = sample_logits.at[rows, cols].set(jnp.float32(-1e37))

        logits = jnp.concatenate([true_logits, sample_logits], axis=1)
        new_targets = jnp.zeros((B,), jnp.int32)
        return logits, new_targets

    # ---------------- eval path ----------------
    def full(self, inputs, labels):
        V = self.ntokens
        logits = _streamed_logits(
            inputs.astype(jnp.bfloat16),
            self.weight_bf16_padded,          # cached, pre-padded bf16 weights
            self.bias_row_padded,             # cached, pre-padded bias row
            self._full_tile, self._full_depth, self._vmem_cap)
        return logits[:, :V], labels


# ----------------------------------------------------------------------------
# Pure-JAX references (match the kernel's bf16-input / f32-accumulate matmul)
# ----------------------------------------------------------------------------
def _bf16_dot(a, b):
    return lax.dot_general(
        a.astype(jnp.bfloat16), b.astype(jnp.bfloat16),
        dimension_numbers=(((1,), (1,)), ((), ())),
        preferred_element_type=jnp.float32)


def _sampled_ref(weight, bias, inputs, labels, sample_ids, true_freq, sample_freq):
    tw = weight[labels]
    tb = bias[labels]
    sw = weight[sample_ids]
    sb = bias[sample_ids]
    true_logits = jnp.sum(inputs * tw, axis=1) + tb - jnp.log(true_freq)
    sample_logits = _bf16_dot(inputs, sw) + sb[None, :] - jnp.log(sample_freq)[None, :]
    return jnp.concatenate([true_logits[:, None], sample_logits], axis=1)


# ----------------------------------------------------------------------------
if __name__ == "__main__":
    B, H, NTOKENS, NSAMPLED = 8, 32, 64, 16

    key = jax.random.PRNGKey(0)
    k_in, k_lab, k_sid, k_tf, k_sf, k_param = jax.random.split(key, 6)

    inputs = jax.random.normal(k_in, (B, H), jnp.float32)
    labels = jax.random.randint(k_lab, (B,), 0, NTOKENS, jnp.int32)
    sample_ids = jax.random.randint(k_sid, (NSAMPLED,), 0, NTOKENS, jnp.int32)
    true_freq = jax.random.uniform(k_tf, (B,), jnp.float32, 0.05, 1.0)
    sample_freq = jax.random.uniform(k_sf, (NSAMPLED,), jnp.float32, 0.05, 1.0)

    model = SampledSoftmax(NTOKENS, NSAMPLED, H, tied_weight=None, key=k_param)

    # ---- training / sampled path ----
    model.training = True
    logits, new_targets = model(inputs, labels, sample_ids, true_freq,
                                sample_freq, acc_hits=None,
                                remove_accidental_match=False)
    logits = jax.block_until_ready(logits)
    new_targets = jax.block_until_ready(new_targets)

    ref = _sampled_ref(model.weight, model.bias, inputs, labels, sample_ids,
                       true_freq, sample_freq)
    assert logits.shape == (B, 1 + NSAMPLED)
    assert new_targets.shape == (B,)
    assert jnp.allclose(logits, ref, atol=5e-3, rtol=5e-3)

    # ---- accidental-hit removal path ----
    acc_hits = (jnp.array([0, 3], jnp.int32), jnp.array([2, 5], jnp.int32))
    logits_acc, _ = model(inputs, labels, sample_ids, true_freq, sample_freq,
                          acc_hits=acc_hits, remove_accidental_match=True)
    logits_acc = jax.block_until_ready(logits_acc)
    assert float(logits_acc[0, 1 + 2]) <= -1e36
    assert float(logits_acc[3, 1 + 5]) <= -1e36

    # ---- eval / full path ----
    model.training = False
    full_logits, out_labels = model(inputs, labels)
    full_logits = jax.block_until_ready(full_logits)
    full_ref = _bf16_dot(inputs, model.weight) + model.bias[None, :]
    assert full_logits.shape == (B, NTOKENS)
    assert jnp.allclose(full_logits, full_ref, atol=5e-3, rtol=5e-3)

    print("KERNEL_OK")
</pallas_src>

<mosaic_0001>
module attributes {stable_mosaic.version = 11 : i64} {
  func.func @streamed_logits_kernel(%arg0: i32, %arg1: memref<8x32xbf16, #tpu.memory_space<vmem>>, %arg2: memref<128x32xbf16, #tpu.memory_space<vmem>>, %arg3: memref<1x128xf32, #tpu.memory_space<vmem>>, %arg4: memref<8x128xf32, #tpu.memory_space<vmem>>) attributes {dimension_semantics = [#tpu.dimension_semantics<parallel>], iteration_bounds = array<i64: 1>, scalar_prefetch = 0 : i64, scratch_operands = 0 : i64, tpu.core_type = #tpu.core_type<tc>, window_params = [{pipeline_mode = #tpu.pipeline_mode<synchronous>, transform_indices = @transform_0, window_bounds = array<i64: 8, 32>}, {transform_indices = @transform_1, window_bounds = array<i64: 128, 32>}, {transform_indices = @transform_2, window_bounds = array<i64: 1, 128>}, {transform_indices = @transform_3, window_bounds = array<i64: 8, 128>}]} {
    %c0 = arith.constant 0 : index
    %c0_0 = arith.constant 0 : index
    %0 = vector.load %arg1[%c0, %c0_0] : memref<8x32xbf16, #tpu.memory_space<vmem>>, vector<8x32xbf16>
    %c0_1 = arith.constant 0 : index
    %c0_2 = arith.constant 0 : index
    %1 = vector.load %arg2[%c0_1, %c0_2] : memref<128x32xbf16, #tpu.memory_space<vmem>>, vector<128x32xbf16>
    %cst = arith.constant dense<0.000000e+00> : vector<8x128xf32>
    %2 = tpu.matmul %0, %1, %cst {dimension_numbers = #tpu.dot_dimension_numbers<[1], [1], [0], [0], [0, 0, 1, 0], [], []>} : vector<8x32xbf16>, vector<128x32xbf16>, vector<8x128xf32> -> vector<8x128xf32>
    %c0_3 = arith.constant 0 : index
    %c0_4 = arith.constant 0 : index
    %3 = vector.load %arg3[%c0_3, %c0_4] : memref<1x128xf32, #tpu.memory_space<vmem>>, vector<1x128xf32>
    %4 = vector.broadcast %3 : vector<1x128xf32> to vector<8x128xf32>
    %5 = arith.addf %2, %4 : vector<8x128xf32>
    %c0_5 = arith.constant 0 : index
    %c0_6 = arith.constant 0 : index
    %6 = vector.load %arg4[%c0_5, %c0_6] : memref<8x128xf32, #tpu.memory_space<vmem>>, vector<8x128xf32>
    tpu.vector_store %arg4[%c0_5, %c0_6], %5 {strides = array<i32>} : memref<8x128xf32, #tpu.memory_space<vmem>>, vector<8x128xf32>,
    return
  }
  func.func @transform_0(%arg0: i32) -> (i32, i32) {
    %c0_i32 = arith.constant 0 : i32
    %c0_i32_0 = arith.constant 0 : i32
    %c0_i32_1 = arith.constant 0 : i32
    return %c0_i32, %c0_i32_0 : i32, i32
  }
  func.func @transform_1(%arg0: i32) -> (i32, i32) {
    %c0_i32 = arith.constant 0 : i32
    %c0_i32_0 = arith.constant 0 : i32
    return %arg0, %c0_i32 : i32, i32
  }
  func.func @transform_2(%arg0: i32) -> (i32, i32) {
    %c0_i32 = arith.constant 0 : i32
    %c0_i32_0 = arith.constant 0 : i32
    return %c0_i32, %arg0 : i32, i32
  }
  func.func @transform_3(%arg0: i32) -> (i32, i32) {
    %c0_i32 = arith.constant 0 : i32
    %c0_i32_0 = arith.constant 0 : i32
    return %c0_i32, %arg0 : i32, i32
  }
}

</mosaic_0001>

<llo_original>
// kernel: tpu_custom_call.1
$region0: #{tpu_custom_call.1}
  #allocation0 [shape = 'u32[]', space=smem, size = 0x4, offset = 0x4, fixed_abs, tag = 'smem constant byte address 0x4 - core index']
  #allocation1 [shape = 'u32[144,128]{1,0:T(1,128)}', space=vmem, size = 0x12000, scoped, tag = 'internal scratch']
  %s0 = inlined_call_operand.vmem [shape: bf16[8,32], index: 0, kind: input, shape index: {}]
  %s1 = inlined_call_operand.vmem [shape: bf16[128,32], index: 1, kind: input, shape index: {}]
  %s2 = inlined_call_operand.vmem [shape: f32[1,128], index: 2, kind: input, shape index: {}]
  %s3 = inlined_call_operand.hbm [shape: f32[8,128], index: 3, kind: output, shape index: {}]
  %s4 = sld [smem:[#allocation0]]
  $region22: #{tpu_custom_call.1} parent=0
    _
  %s6 = ssub.s32 1, %s4
  %s7 = scalar_select 0, %s6, %s4
  $region1: #{tpu_custom_call.1} parent=0
    #allocation2 [shape = 'u8[4096]{0}', space=vmem, size = 0x1000, scoped, tag = 'output window, operand 0, single buffered']
    #allocation3 [shape = 's32[1]{0}', space=sflag, size = 0x4, scoped, tag = 'scoped memory for tpu_custom_call.1']
    %8 = vsyncpa [#allocation3], 0
    // Predicated region
    $region2: #{tpu_custom_call.1} parent=1 // pred_check
      _
    $region3: #{tpu_custom_call.1} parent=1 // pred_check_branch
      %10 = sbr.rel (0) target = $region5
    $region4: #{tpu_custom_call.1} parent=1 // pred_region
      _
    $region5: #{tpu_custom_call.1} parent=1 // pred_fallthru
      _
    // Predicated region
    $region6: #{tpu_custom_call.1} parent=1 // pred_check
      _
    $region7: #{tpu_custom_call.1} parent=1 // pred_check_branch
      %12 = sbr.rel (0) target = $region9
    $region8: #{tpu_custom_call.1} parent=1 // pred_region
      _
    $region9: #{tpu_custom_call.1} parent=1 // pred_fallthru
      _
    // Predicated region
    $region10: #{tpu_custom_call.1} parent=1 // pred_check
      _
    $region11: #{tpu_custom_call.1} parent=1 // pred_check_branch
      %14 = sbr.rel (0) target = $region13
    $region12: #{tpu_custom_call.1} parent=1 // pred_region
      _
    $region13: #{tpu_custom_call.1} parent=1 // pred_fallthru
      _
    %v16 = vld [vmem:[%s0] sm:$0xf]
    %v17 = vld [vmem:[%s1] sm:$0xf]
    %v18 = vld [vmem:[%s1 + $0x4] sm:$0xf]
    %v19 = vld [vmem:[%s1 + $0x8] sm:$0xf]
    %v20 = vld [vmem:[%s1 + $0xc] sm:$0xf]
    %v21 = vld [vmem:[%s1 + $0x10] sm:$0xf]
    %v22 = vld [vmem:[%s1 + $0x14] sm:$0xf]
    %v23 = vld [vmem:[%s1 + $0x18] sm:$0xf]
    %v24 = vld [vmem:[%s1 + $0x1c] sm:$0xf]
    %v25 = vld [vmem:[%s1 + $0x20] sm:$0xf]
    %v26 = vld [vmem:[%s1 + $0x24] sm:$0xf]
    %v27 = vld [vmem:[%s1 + $0x28] sm:$0xf]
    %v28 = vld [vmem:[%s1 + $0x2c] sm:$0xf]
    %v29 = vld [vmem:[%s1 + $0x30] sm:$0xf]
    %v30 = vld [vmem:[%s1 + $0x34] sm:$0xf]
    %v31 = vld [vmem:[%s1 + $0x38] sm:$0xf]
    %v32 = vld [vmem:[%s1 + $0x3c] sm:$0xf]
    %v33 = vld [vmem:[%s2] sm:$0x1]
    %v35 = vlaneseq
    %v36 = vshrl.u32 %v35, 7
    %v37 = vsub.s32 0, %v36
    %v38 = vrot.slane %v33, %v37
    %v56 = vunpack.c.l.b16 %v17
    %v57 = vunpack.c.l.b16 %v18
    %v58 = vunpack.c.l.b16 %v19
    %v59 = vunpack.c.l.b16 %v20
    %v60 = vunpack.c.l.b16 %v21
    %v61 = vunpack.c.l.b16 %v22
    %v62 = vunpack.c.l.b16 %v23
    %v63 = vunpack.c.l.b16 %v24
    %v64 = vunpack.c.l.b16 %v25
    %v65 = vunpack.c.l.b16 %v26
    %v66 = vunpack.c.l.b16 %v27
    %v67 = vunpack.c.l.b16 %v28
    %v68 = vunpack.c.l.b16 %v29
    %v69 = vunpack.c.l.b16 %v30
    %v70 = vunpack.c.l.b16 %v31
    %v71 = vunpack.c.l.b16 %v32
    %v72 = vpack.c.b16 %v57, %v56
    %v73 = vpack.c.b16 %v59, %v58
    %v74 = vpack.c.b16 %v61, %v60
    %v75 = vpack.c.b16 %v63, %v62
    %v76 = vpack.c.b16 %v65, %v64
    %v77 = vpack.c.b16 %v67, %v66
    %v78 = vpack.c.b16 %v69, %v68
    %v79 = vpack.c.b16 %v71, %v70
    %vm80 = vcmask 261120
    %v82 = vsel %vm80, %v16, 0
    %v85 = vsel %vm80, %v72, 0
    %v88 = vsel %vm80, %v73, 0
    %v91 = vsel %vm80, %v74, 0
    %v94 = vsel %vm80, %v75, 0
    %v97 = vsel %vm80, %v76, 0
    %v100 = vsel %vm80, %v77, 0
    %v103 = vsel %vm80, %v78, 0
    %v106 = vsel %vm80, %v79, 0
    %108 = vmatprep.subr.bf16.mxu0 0
    %109 = vmatpush1.bf16.xpose.msra.mxu0 %v106
    %110 = vmatprep.subr.bf16.mxu0 0
    %111 = vmatpush1.bf16.xpose.msra.mxu0 %v103
    %112 = vmatprep.subr.bf16.mxu0 0
    %113 = vmatpush1.bf16.xpose.msra.mxu0 %v100
    %114 = vmatprep.subr.bf16.mxu0 0
    %115 = vmatpush1.bf16.xpose.msra.mxu0 %v97
    %116 = vmatprep.subr.bf16.mxu0 0
    %117 = vmatpush1.bf16.xpose.msra.mxu0 %v94
    %118 = vmatprep.subr.bf16.mxu0 0
    %119 = vmatpush1.bf16.xpose.msra.mxu0 %v91
    %120 = vmatprep.subr.bf16.mxu0 0
    %121 = vmatpush1.bf16.xpose.msra.mxu0 %v88
    %122 = vmatprep.subr.bf16.mxu0 0
    %123 = vmatpush1.bf16.xpose.msra.mxu0 %v85
    %124 = vmatprep.subr.bf16.mxu0 0
    %125 = vmatpush2.bf16.xpose.msra.mxu0 0
    %126 = vmatprep.subr.bf16.mxu0 0
    %127 = vmatpush2.bf16.xpose.msra.mxu0 0
    %128 = vmatprep.subr.bf16.mxu0 0
    %129 = vmatpush2.bf16.xpose.msra.mxu0 0
    %130 = vmatprep.subr.bf16.mxu0 0
    %131 = vmatpush2.bf16.xpose.msra.mxu0 0
    %132 = vmatprep.subr.bf16.mxu0 0
    %133 = vmatpush2.bf16.xpose.msra.mxu0 0
    %134 = vmatprep.subr.bf16.mxu0 0
    %135 = vmatpush2.bf16.xpose.msra.mxu0 0
    %136 = vmatprep.subr.bf16.mxu0 0
    %137 = vmatpush2.bf16.xpose.msra.mxu0 0
    %138 = vmatprep.subr.bf16.mxu0 0
    %139 = vmatpush2.bf16.xpose.msra.mxu0 0
    %140 = vmatprep.mubr.bf16.mxu0 0
    %141 = vmatmul.mubr.bf16.gmra.mxu0 %v82
    %v142 = vpop.f32.mrf.mxu0
    %v143 = vadd.f32 %v38, %v142
    %v144 = vpop.f32.mrf.mxu0
    %v145 = vpop.f32.mrf.mxu0
    %v146 = vpop.f32.mrf.mxu0
    %147 = vdwg.mxu0
    %148 = vst [vmem:[#allocation2] sm:$0xff] %v143
    // Predicated region
    $region14: #{tpu_custom_call.1} parent=1 // pred_check
      _
    $region15: #{tpu_custom_call.1} parent=1 // pred_check_branch
      %150 = sbr.rel (0) target = $region17
    $region16: #{tpu_custom_call.1} parent=1 // pred_region
      %s152 = ssub.s32 128, 128
      %153 = vsyncadd [#allocation3], %s152
      %s155 = sshll.u32 [#allocation2], 4
      %s156 = int_to_ptr.vmem [resolvable:$true] %s155
      %158 = dma.vmem_to_hbm [thread:$0]  %s156, 128, %s3, [#allocation3]
    $region17: #{tpu_custom_call.1} parent=1 // pred_fallthru
      _
    // Predicated region
    $region18: #{tpu_custom_call.1} parent=1 // pred_check
      _
    $region19: #{tpu_custom_call.1} parent=1 // pred_check_branch
      %160 = sbr.rel (0) target = $region21
    $region20: #{tpu_custom_call.1} parent=1 // pred_region
      %161 = dma.done [#allocation3], 128
    $region21: #{tpu_custom_call.1} parent=1 // pred_fallthru
      _
    %162 = vsyncpa [#allocation3], 1

</llo_original>
